<compile_context>
chip_gen: v7x
topology: tpu7x:2x2x1
jax: 0.10.0
libtpu: 0.0.40
codegen_flags: <defaults>
</compile_context>

<pallas_src>
import functools

import jax
import jax.numpy as jnp
from jax.experimental import pallas as pl
from jax.experimental.pallas import tpu as pltpu


# --------------------------------------------------------------------------- #
# shared in-kernel helpers
# --------------------------------------------------------------------------- #
def _attn_logits(xg_bf16, bias1, w1x, w2, b2):
    """linear1 (1x1 conv) -> tanh -> linear2 on one (F, tT) slab.

    bf16 MXU operands, f32 accumulation.  bias1 already contains the
    (hoisted) global-context contribution when enabled.
    """
    h = jnp.tanh(
        jnp.dot(w1x, xg_bf16, preferred_element_type=jnp.float32) + bias1)   # (Bneck, tT)
    return jnp.dot(w2, h.astype(jnp.bfloat16),
                   preferred_element_type=jnp.float32) + b2                   # (F, tT)


def _finalize(d, s1, s2):
    """mean/std from the softmax-weighted sums (exact reciprocal, runs once)."""
    inv_d = 1.0 / d
    mean = s1 * inv_d
    var = (s2 - mean * s1) * inv_d          # == E[x^2] - mean^2
    std = jnp.sqrt(jnp.maximum(var, 1e-7))
    return mean, std


# --------------------------------------------------------------------------- #
# kernel 1: T fits in a single tile (no scratch, G batch elements per step)
# --------------------------------------------------------------------------- #
def _astp_single_tile_kernel(x_ref, bias1_ref, w1x_ref, w2_ref, b2_ref,
                             mean_ref, std_ref, *, G):
    w1x = w1x_ref[...]                       # (Bneck, F) bf16
    w2 = w2_ref[...]                         # (F, Bneck) bf16
    b2 = b2_ref[...]                         # (F, 1)     f32
    for g in range(G):                       # G is small & static -> unrolled
        xg = x_ref[g]                        # (F, T) bf16
        xf = xg.astype(jnp.float32)
        logits = _attn_logits(xg, bias1_ref[g], w1x, w2, b2)       # (F, T) f32
        m = jnp.max(logits, axis=-1, keepdims=True)
        e = jnp.exp(logits - m)
        wx = e * xf                          # reused for s1 and s2
        d = jnp.sum(e, axis=-1, keepdims=True)
        s1 = jnp.sum(wx, axis=-1, keepdims=True)
        s2 = jnp.sum(wx * xf, axis=-1, keepdims=True)
        mean, std = _finalize(d, s1, s2)
        mean_ref[0, g] = mean[:, 0]          # lane-dense (F,) output rows
        std_ref[0, g] = std[:, 0]


# --------------------------------------------------------------------------- #
# kernel 2: long T, time-tiled, lane-blocked online softmax (G = 1)
# --------------------------------------------------------------------------- #
def _astp_multi_tile_kernel(x_ref, bias1_ref, w1x_ref, w2_ref, b2_ref,
                            mean_ref, std_ref,
                            m_sc, d_sc, s1_sc, s2_sc,
                            *, t_valid, t_tile, n_t):
    L = 128
    n_chunks = t_tile // L                   # t_tile is a multiple of 128
    ti = pl.program_id(1)

    @pl.when(ti == 0)
    def _init():
        m_sc[...] = jnp.full_like(m_sc, -jnp.inf)
        d_sc[...] = jnp.zeros_like(d_sc)
        s1_sc[...] = jnp.zeros_like(s1_sc)
        s2_sc[...] = jnp.zeros_like(s2_sc)

    xg = x_ref[0]                            # (F, t_tile) bf16
    xf = xg.astype(jnp.float32)
    logits = _attn_logits(xg, bias1_ref[0], w1x_ref[...], w2_ref[...], b2_ref[...])

    if (t_tile * n_t) != t_valid:
        # Ragged T: only the LAST tile has an overhang with undefined content
        # (x is never padded in HBM).  Mask it there and only there, so the
        # fully-valid interior tiles skip both selects.
        def _mask_tail(ops):
            lg, xv = ops
            t_idx = ti * t_tile + jax.lax.broadcasted_iota(jnp.int32, lg.shape, 1)
            valid = t_idx < t_valid
            return (jnp.where(valid, lg, -jnp.inf),    # drops out of the softmax
                    jnp.where(valid, xv, 0.0))         # garbage never reaches wx
        logits, xf = jax.lax.cond(ti == n_t - 1, _mask_tail, lambda ops: ops,
                                  (logits, xf))

    # Lane-blocked online softmax: running stats are (F, 128) per-lane-slot,
    # so every per-tile reduction below is a VPU elementwise op (no XLU).
    m_prev = m_sc[...]                       # (F, 128)
    tile_max = logits[:, 0:L]
    for k in range(1, n_chunks):
        tile_max = jnp.maximum(tile_max, logits[:, k * L:(k + 1) * L])
    m_new = jnp.maximum(m_prev, tile_max)
    rescale = jnp.exp(m_prev - m_new)        # one (F, 128) EUP pass per tile

    d_t = jnp.zeros_like(m_new)
    s1_t = jnp.zeros_like(m_new)
    s2_t = jnp.zeros_like(m_new)
    for k in range(n_chunks):                # strip-mined: chain stays in vregs
        lg = logits[:, k * L:(k + 1) * L]
        xk = xf[:, k * L:(k + 1) * L]
        e = jnp.exp(lg - m_new)
        wx = e * xk
        d_t = d_t + e
        s1_t = s1_t + wx
        s2_t = s2_t + wx * xk

    m_sc[...] = m_new
    d_sc[...] = rescale * d_sc[...] + d_t
    s1_sc[...] = rescale * s1_sc[...] + s1_t
    s2_sc[...] = rescale * s2_sc[...] + s2_t

    @pl.when(ti == n_t - 1)
    def _finish():
        # Single cross-lane combine per batch element.
        m_lanes = m_sc[...]                                   # (F, 128)
        m_glob = jnp.max(m_lanes, axis=-1, keepdims=True)     # (F, 1)
        w = jnp.exp(m_lanes - m_glob)
        d = jnp.sum(w * d_sc[...], axis=-1, keepdims=True)
        s1 = jnp.sum(w * s1_sc[...], axis=-1, keepdims=True)
        s2 = jnp.sum(w * s2_sc[...], axis=-1, keepdims=True)
        mean, std = _finalize(d, s1, s2)
        mean_ref[0, 0] = mean[:, 0]
        std_ref[0, 0] = std[:, 0]


# --------------------------------------------------------------------------- #
# wrapper
# --------------------------------------------------------------------------- #
def astp_forward(x, params, global_context_att=False, t_tile_max=512):
    """x: (B, F, T) or (B, C, F, T). Returns (B, 2*F_eff) float32."""
    if x.ndim == 4:
        x = x.reshape(x.shape[0], x.shape[1] * x.shape[2], x.shape[3])
    assert x.ndim == 3
    B, F, T = x.shape

    w1, b1, w2, b2 = params["w1"], params["b1"], params["w2"], params["b2"]
    Bneck = w1.shape[0]
    c_in = 3 * F if global_context_att else F
    assert w1.shape == (Bneck, c_in) and w2.shape == (F, Bneck)
    assert b1.shape == (Bneck, 1) and b2.shape == (F, 1)

    # ---- per-batch linear1 bias (f32).  The global-context term is time
    # independent, so it is hoisted here as one small f32 matmul instead of
    # per-grid-step N=1 MXU matvecs inside the kernel.
    b1_row = b1.astype(jnp.float32).reshape(1, Bneck)
    if global_context_att:
        xf32 = x.astype(jnp.float32)
        ctx_mean = jnp.mean(xf32, axis=-1)                                    # (B, F)
        ctx_std = jnp.sqrt(jnp.var(xf32, axis=-1, ddof=1) + 1e-7)             # unbiased, as torch.var
        w1f = w1.astype(jnp.float32)
        ctx_bias = ctx_mean @ w1f[:, F:2 * F].T + ctx_std @ w1f[:, 2 * F:].T  # (B, Bneck)
        bias1 = (b1_row + ctx_bias)[:, :, None].astype(jnp.float32)           # (B, Bneck, 1)
        w1x = w1[:, :F]
    else:
        bias1 = jnp.broadcast_to(b1_row[:, :, None], (B, Bneck, 1)).astype(jnp.float32)
        w1x = w1

    # ---- weights bf16 once (MXU-native); biases stay f32.
    w1x_bf = w1x.astype(jnp.bfloat16)
    w2_bf = w2.astype(jnp.bfloat16)
    b2_f = b2.astype(jnp.float32)

    # ---- x streamed as bf16 (HBM-bound kernel); stats stay f32 in-kernel.
    x_bf = x if x.dtype == jnp.bfloat16 else x.astype(jnp.bfloat16)

    t_tile_max = max(128, (t_tile_max // 128) * 128)

    if T <= t_tile_max:
        # Single time tile: no online-softmax scratch.  Pack several batch
        # elements per grid step (~512 time columns per step), but keep
        # nb >= 2 so v7x can shard the parallel batch axis across both cores.
        G = max(1, min(B, 8, 512 // max(T, 1)))
        if B >= 2:
            G = min(G, (B + 1) // 2)
        nb = (B + G - 1) // G
        B_pad = nb * G
        if B_pad != B:                       # only the tiny batch axis is padded
            x_bf = jnp.pad(x_bf, ((0, B_pad - B), (0, 0), (0, 0)))
            bias1 = jnp.pad(bias1, ((0, B_pad - B), (0, 0), (0, 0)))

        kernel = functools.partial(_astp_single_tile_kernel, G=G)
        mean_o, std_o = pl.pallas_call(
            kernel,
            out_shape=(jax.ShapeDtypeStruct((nb, G, F), jnp.float32),
                       jax.ShapeDtypeStruct((nb, G, F), jnp.float32)),
            grid_spec=pltpu.PrefetchScalarGridSpec(
                num_scalar_prefetch=0,
                grid=(nb,),
                in_specs=[
                    pl.BlockSpec((G, F, T), lambda b: (b, 0, 0)),
                    pl.BlockSpec((G, Bneck, 1), lambda b: (b, 0, 0)),
                    pl.BlockSpec((Bneck, F), lambda b: (0, 0)),
                    pl.BlockSpec((F, Bneck), lambda b: (0, 0)),
                    pl.BlockSpec((F, 1), lambda b: (0, 0)),
                ],
                out_specs=(pl.BlockSpec((1, G, F), lambda b: (b, 0, 0)),
                           pl.BlockSpec((1, G, F), lambda b: (b, 0, 0))),
            ),
            compiler_params=pltpu.CompilerParams(
                dimension_semantics=("parallel",)),
        )(x_bf, bias1, w1x_bf, w2_bf, b2_f)
        mean_o = mean_o.reshape(B_pad, F)[:B]
        std_o = std_o.reshape(B_pad, F)[:B]
    else:
        # Long T: time-tiled lane-blocked online softmax.  x is NOT padded or
        # copied in HBM; the ragged last tile is masked in-kernel.
        t_tile = t_tile_max
        n_t = (T + t_tile - 1) // t_tile
        kernel = functools.partial(_astp_multi_tile_kernel,
                                   t_valid=T, t_tile=t_tile, n_t=n_t)
        mean_o, std_o = pl.pallas_call(
            kernel,
            out_shape=(jax.ShapeDtypeStruct((B, 1, F), jnp.float32),
                       jax.ShapeDtypeStruct((B, 1, F), jnp.float32)),
            grid_spec=pltpu.PrefetchScalarGridSpec(
                num_scalar_prefetch=0,
                grid=(B, n_t),
                in_specs=[
                    pl.BlockSpec((1, F, t_tile), lambda b, t: (b, 0, t)),
                    pl.BlockSpec((1, Bneck, 1), lambda b, t: (b, 0, 0)),
                    pl.BlockSpec((Bneck, F), lambda b, t: (0, 0)),
                    pl.BlockSpec((F, Bneck), lambda b, t: (0, 0)),
                    pl.BlockSpec((F, 1), lambda b, t: (0, 0)),
                ],
                out_specs=(pl.BlockSpec((1, 1, F), lambda b, t: (b, 0, 0)),
                           pl.BlockSpec((1, 1, F), lambda b, t: (b, 0, 0))),
                scratch_shapes=[pltpu.VMEM((F, 128), jnp.float32)
                                for _ in range(4)],
            ),
            compiler_params=pltpu.CompilerParams(
                dimension_semantics=("parallel", "arbitrary")),
        )(x_bf, bias1, w1x_bf, w2_bf, b2_f)
        mean_o = mean_o.reshape(B, F)
        std_o = std_o.reshape(B, F)

    return jnp.concatenate([mean_o, std_o], axis=1)


# --------------------------------------------------------------------------- #
# params + pure-JAX reference (mirrors the PyTorch forward)
# --------------------------------------------------------------------------- #
def init_params(key, in_dim, bottleneck_dim=128, global_context_att=False):
    c_in = in_dim * 3 if global_context_att else in_dim
    k1, k2, k3, k4 = jax.random.split(key, 4)
    return {
        "w1": jax.random.normal(k1, (bottleneck_dim, c_in), jnp.float32) * 0.05,
        "b1": jax.random.normal(k2, (bottleneck_dim, 1), jnp.float32) * 0.05,
        "w2": jax.random.normal(k3, (in_dim, bottleneck_dim), jnp.float32) * 0.05,
        "b2": jax.random.normal(k4, (in_dim, 1), jnp.float32) * 0.05,
    }


def astp_reference(x, params, global_context_att=False):
    if x.ndim == 4:
        x = x.reshape(x.shape[0], x.shape[1] * x.shape[2], x.shape[3])
    if global_context_att:
        ctx_mean = jnp.broadcast_to(jnp.mean(x, axis=-1, keepdims=True), x.shape)
        ctx_std = jnp.broadcast_to(
            jnp.sqrt(jnp.var(x, axis=-1, keepdims=True, ddof=1) + 1e-7), x.shape)
        x_in = jnp.concatenate([x, ctx_mean, ctx_std], axis=1)
    else:
        x_in = x
    h = jnp.tanh(jnp.einsum("oc,bct->bot", params["w1"], x_in) + params["b1"][None])
    logits = jnp.einsum("fo,bot->bft", params["w2"], h) + params["b2"][None]
    alpha = jax.nn.softmax(logits, axis=2)
    mean = jnp.sum(alpha * x, axis=2)
    var = jnp.sum(alpha * x * x, axis=2) - mean ** 2
    std = jnp.sqrt(jnp.maximum(var, 1e-7))
    return jnp.concatenate([mean, std], axis=1)


# --------------------------------------------------------------------------- #
# smoke test
# --------------------------------------------------------------------------- #
if __name__ == "__main__":
    key = jax.random.PRNGKey(0)
    kx1, kx2, kx3, kp1, kp2 = jax.random.split(key, 5)

    # bf16 x stream + bf16 MXU operands vs f32 reference
    TOL = 3e-2

    def check(x, params, gc, **kw):
        out = jax.block_until_ready(
            astp_forward(x, params, global_context_att=gc, **kw))
        ref = astp_reference(x, params, global_context_att=gc)
        assert out.shape == ref.shape, (out.shape, ref.shape)
        err = float(jnp.max(jnp.abs(out - ref)))
        assert jnp.allclose(out, ref, atol=TOL, rtol=TOL), err

    # 1) resnet-style 4D input (B, C, F, T) -> in_dim = C*F, single-tile path
    B, C, Fdim, T = 2, 4, 16, 8
    in_dim = C * Fdim
    x4 = jax.random.normal(kx1, (B, C, Fdim, T), jnp.float32)
    p_plain = init_params(kp1, in_dim, bottleneck_dim=32, global_context_att=False)
    check(x4, p_plain, gc=False)

    # 2) global-context path (ctx bias hoisted to the wrapper in f32)
    p_gc = init_params(kp2, in_dim, bottleneck_dim=32, global_context_att=True)
    check(x4, p_gc, gc=True)

    # 3) batch-grouped single-tile path (G > 1, batch padding, nb >= 2)
    x_grp = jax.random.normal(kx2, (5, in_dim, T), jnp.float32)
    check(x_grp, p_plain, gc=False)

    # 4) multi-tile path: lane-blocked online softmax + ragged last-tile mask
    x_long = jax.random.normal(kx3, (2, in_dim, 200), jnp.float32)
    check(x_long, p_plain, gc=False, t_tile_max=128)

    print("KERNEL_OK")
</pallas_src>

<mosaic_0001>
module attributes {stable_mosaic.version = 11 : i64} {
  func.func @_astp_single_tile_kernel(%arg0: i32, %arg1: memref<1x64x8xbf16, #tpu.memory_space<vmem>>, %arg2: memref<1x32x1xf32, #tpu.memory_space<vmem>>, %arg3: memref<32x64xbf16, #tpu.memory_space<vmem>>, %arg4: memref<64x32xbf16, #tpu.memory_space<vmem>>, %arg5: memref<64x1xf32, #tpu.memory_space<vmem>>, %arg6: memref<1x1x64xf32, #tpu.memory_space<vmem>>, %arg7: memref<1x1x64xf32, #tpu.memory_space<vmem>>) attributes {dimension_semantics = [#tpu.dimension_semantics<parallel>], iteration_bounds = array<i64: 2>, scalar_prefetch = 0 : i64, scratch_operands = 0 : i64, tpu.core_type = #tpu.core_type<tc>, window_params = [{transform_indices = @transform_0, window_bounds = array<i64: 1, 64, 8>}, {transform_indices = @transform_1, window_bounds = array<i64: 1, 32, 1>}, {pipeline_mode = #tpu.pipeline_mode<synchronous>, transform_indices = @transform_2, window_bounds = array<i64: 32, 64>}, {pipeline_mode = #tpu.pipeline_mode<synchronous>, transform_indices = @transform_3, window_bounds = array<i64: 64, 32>}, {pipeline_mode = #tpu.pipeline_mode<synchronous>, transform_indices = @transform_4, window_bounds = array<i64: 64, 1>}, {transform_indices = @transform_5, window_bounds = array<i64: 1, 1, 64>}, {transform_indices = @transform_6, window_bounds = array<i64: 1, 1, 64>}]} {
    %c0 = arith.constant 0 : index
    %c0_0 = arith.constant 0 : index
    %0 = vector.load %arg3[%c0, %c0_0] : memref<32x64xbf16, #tpu.memory_space<vmem>>, vector<32x64xbf16>
    %c0_1 = arith.constant 0 : index
    %c0_2 = arith.constant 0 : index
    %1 = vector.load %arg4[%c0_1, %c0_2] : memref<64x32xbf16, #tpu.memory_space<vmem>>, vector<64x32xbf16>
    %c0_3 = arith.constant 0 : index
    %c0_4 = arith.constant 0 : index
    %2 = vector.load %arg5[%c0_3, %c0_4] : memref<64x1xf32, #tpu.memory_space<vmem>>, vector<64x1xf32>
    %c0_5 = arith.constant 0 : index
    %c0_6 = arith.constant 0 : index
    %c0_7 = arith.constant 0 : index
    %3 = vector.load %arg1[%c0_5, %c0_6, %c0_7] : memref<1x64x8xbf16, #tpu.memory_space<vmem>>, vector<1x64x8xbf16>
    %4 = vector.shape_cast %3 : vector<1x64x8xbf16> to vector<64x8xbf16>
    %5 = arith.extf %4 : vector<64x8xbf16> to vector<64x8xf32>
    %c0_8 = arith.constant 0 : index
    %c0_9 = arith.constant 0 : index
    %c0_10 = arith.constant 0 : index
    %6 = vector.load %arg2[%c0_8, %c0_9, %c0_10] : memref<1x32x1xf32, #tpu.memory_space<vmem>>, vector<1x32x1xf32>
    %7 = vector.shape_cast %6 : vector<1x32x1xf32> to vector<32x1xf32>
    %cst = arith.constant dense<0.000000e+00> : vector<32x8xf32>
    %8 = tpu.matmul %0, %4, %cst {dimension_numbers = #tpu.dot_dimension_numbers<[1], [0], [0], [1], [0, 0, 1, 1], [], []>} : vector<32x64xbf16>, vector<64x8xbf16>, vector<32x8xf32> -> vector<32x8xf32>
    %9 = vector.broadcast %7 : vector<32x1xf32> to vector<32x8xf32>
    %10 = arith.addf %8, %9 : vector<32x8xf32>
    %11 = math.tanh %10 : vector<32x8xf32>
    %12 = arith.truncf %11 : vector<32x8xf32> to vector<32x8xbf16>
    %cst_11 = arith.constant dense<0.000000e+00> : vector<64x8xf32>
    %13 = tpu.matmul %1, %12, %cst_11 {dimension_numbers = #tpu.dot_dimension_numbers<[1], [0], [0], [1], [0, 0, 1, 1], [], []>} : vector<64x32xbf16>, vector<32x8xbf16>, vector<64x8xf32> -> vector<64x8xf32>
    %14 = vector.broadcast %2 : vector<64x1xf32> to vector<64x8xf32>
    %15 = arith.addf %13, %14 : vector<64x8xf32>
    %cst_12 = arith.constant dense<0xFF800000> : vector<64xf32>
    %16 = vector.multi_reduction <maximumf>, %15, %cst_12 [1] : vector<64x8xf32> to vector<64xf32>
    %17 = vector.shape_cast %16 : vector<64xf32> to vector<64x1xf32>
    %18 = vector.broadcast %17 : vector<64x1xf32> to vector<64x8xf32>
    %19 = arith.subf %15, %18 : vector<64x8xf32>
    %20 = math.exp %19 : vector<64x8xf32>
    %21 = arith.mulf %20, %5 : vector<64x8xf32>
    %cst_13 = arith.constant dense<0.000000e+00> : vector<64xf32>
    %22 = vector.multi_reduction <add>, %20, %cst_13 [1] : vector<64x8xf32> to vector<64xf32>
    %23 = vector.shape_cast %22 : vector<64xf32> to vector<64x1xf32>
    %cst_14 = arith.constant dense<0.000000e+00> : vector<64xf32>
    %24 = vector.multi_reduction <add>, %21, %cst_14 [1] : vector<64x8xf32> to vector<64xf32>
    %25 = vector.shape_cast %24 : vector<64xf32> to vector<64x1xf32>
    %26 = arith.mulf %21, %5 : vector<64x8xf32>
    %cst_15 = arith.constant dense<0.000000e+00> : vector<64xf32>
    %27 = vector.multi_reduction <add>, %26, %cst_15 [1] : vector<64x8xf32> to vector<64xf32>
    %28 = vector.shape_cast %27 : vector<64xf32> to vector<64x1xf32>
    %cst_16 = arith.constant 1.000000e+00 : f32
    %29 = vector.broadcast %cst_16 : f32 to vector<64x1xf32>
    %30 = arith.divf %29, %23 : vector<64x1xf32>
    %31 = arith.mulf %25, %30 : vector<64x1xf32>
    %32 = arith.mulf %31, %25 : vector<64x1xf32>
    %33 = arith.subf %28, %32 : vector<64x1xf32>
    %34 = arith.mulf %33, %30 : vector<64x1xf32>
    %cst_17 = arith.constant 1.000000e-07 : f32
    %35 = vector.broadcast %cst_17 : f32 to vector<64x1xf32>
    %36 = arith.maximumf %34, %35 : vector<64x1xf32>
    %37 = math.sqrt %36 : vector<64x1xf32>
    %38 = vector.shape_cast %31 : vector<64x1xf32> to vector<64xf32>
    %c0_18 = arith.constant 0 : index
    %c0_19 = arith.constant 0 : index
    %c0_20 = arith.constant 0 : index
    %39 = vector.load %arg6[%c0_18, %c0_19, %c0_20] : memref<1x1x64xf32, #tpu.memory_space<vmem>>, vector<1x1x64xf32>
    %40 = vector.shape_cast %39 : vector<1x1x64xf32> to vector<64xf32>
    %41 = vector.shape_cast %38 : vector<64xf32> to vector<1x1x64xf32>
    tpu.vector_store %arg6[%c0_18, %c0_19, %c0_20], %41 {strides = array<i32>} : memref<1x1x64xf32, #tpu.memory_space<vmem>>, vector<1x1x64xf32>,
    %42 = vector.shape_cast %37 : vector<64x1xf32> to vector<64xf32>
    %c0_21 = arith.constant 0 : index
    %c0_22 = arith.constant 0 : index
    %c0_23 = arith.constant 0 : index
    %43 = vector.load %arg7[%c0_21, %c0_22, %c0_23] : memref<1x1x64xf32, #tpu.memory_space<vmem>>, vector<1x1x64xf32>
    %44 = vector.shape_cast %43 : vector<1x1x64xf32> to vector<64xf32>
    %45 = vector.shape_cast %42 : vector<64xf32> to vector<1x1x64xf32>
    tpu.vector_store %arg7[%c0_21, %c0_22, %c0_23], %45 {strides = array<i32>} : memref<1x1x64xf32, #tpu.memory_space<vmem>>, vector<1x1x64xf32>,
    return
  }
  func.func @transform_0(%arg0: i32) -> (i32, i32, i32) {
    %c0_i32 = arith.constant 0 : i32
    %c0_i32_0 = arith.constant 0 : i32
    %c0_i32_1 = arith.constant 0 : i32
    return %arg0, %c0_i32, %c0_i32_0 : i32, i32, i32
  }
  func.func @transform_1(%arg0: i32) -> (i32, i32, i32) {
    %c0_i32 = arith.constant 0 : i32
    %c0_i32_0 = arith.constant 0 : i32
    %c0_i32_1 = arith.constant 0 : i32
    return %arg0, %c0_i32, %c0_i32_0 : i32, i32, i32
  }
  func.func @transform_2(%arg0: i32) -> (i32, i32) {
    %c0_i32 = arith.constant 0 : i32
    %c0_i32_0 = arith.constant 0 : i32
    %c0_i32_1 = arith.constant 0 : i32
    return %c0_i32, %c0_i32_0 : i32, i32
  }
  func.func @transform_3(%arg0: i32) -> (i32, i32) {
    %c0_i32 = arith.constant 0 : i32
    %c0_i32_0 = arith.constant 0 : i32
    %c0_i32_1 = arith.constant 0 : i32
    return %c0_i32, %c0_i32_0 : i32, i32
  }
  func.func @transform_4(%arg0: i32) -> (i32, i32) {
    %c0_i32 = arith.constant 0 : i32
    %c0_i32_0 = arith.constant 0 : i32
    %c0_i32_1 = arith.constant 0 : i32
    return %c0_i32, %c0_i32_0 : i32, i32
  }
  func.func @transform_5(%arg0: i32) -> (i32, i32, i32) {
    %c0_i32 = arith.constant 0 : i32
    %c0_i32_0 = arith.constant 0 : i32
    %c0_i32_1 = arith.constant 0 : i32
    return %arg0, %c0_i32, %c0_i32_0 : i32, i32, i32
  }
  func.func @transform_6(%arg0: i32) -> (i32, i32, i32) {
    %c0_i32 = arith.constant 0 : i32
    %c0_i32_0 = arith.constant 0 : i32
    %c0_i32_1 = arith.constant 0 : i32
    return %arg0, %c0_i32, %c0_i32_0 : i32, i32, i32
  }
}

</mosaic_0001>

<llo_original>
// kernel: tpu_custom_call.1
$region0: #{tpu_custom_call.1}
  #allocation0 [shape = 'u32[]', space=smem, size = 0x4, offset = 0x4, fixed_abs, tag = 'smem constant byte address 0x4 - core index']
  #allocation1 [shape = 'u32[144,128]{1,0:T(1,128)}', space=vmem, size = 0x12000, scoped, tag = 'internal scratch']
  %s0 = inlined_call_operand.vmem [shape: bf16[2,64,8], index: 0, kind: input, shape index: {}]
  %s1 = inlined_call_operand.vmem [shape: f32[2,32,1], index: 1, kind: input, shape index: {}]
  %s2 = inlined_call_operand.vmem [shape: bf16[32,64], index: 2, kind: input, shape index: {}]
  %s3 = inlined_call_operand.vmem [shape: bf16[64,32], index: 3, kind: input, shape index: {}]
  %s4 = inlined_call_operand.vmem [shape: f32[64,1], index: 4, kind: input, shape index: {}]
  %s5 = inlined_call_operand.hbm [shape: f32[2,1,64], index: 5, kind: output, shape index: {0}]
  %s6 = inlined_call_operand.hbm [shape: f32[2,1,64], index: 6, kind: output, shape index: {1}]
  %7 = xla_tuple %s5, %s6
  %s8 = sld [smem:[#allocation0]]
  $region61: #{tpu_custom_call.1} parent=0
    _
  %s10 = ssub.s32 1, %s8
  %s11 = scalar_select 0, %s10, %s8
  $region1: #{tpu_custom_call.1} parent=0
    #allocation2 [shape = 'u8[1024]{0}', space=vmem, size = 0x400, scoped, tag = 'output window, operand 0']
    #allocation3 [shape = 's32[2]{0}', space=sflag, size = 0x8, scoped, tag = 'scoped memory for tpu_custom_call.1']
    #allocation4 [shape = 'u8[1024]{0}', space=vmem, size = 0x400, scoped, tag = 'output window, operand 1']
    #allocation5 [shape = 's32[2]{0}', space=sflag, size = 0x8, scoped, tag = 'scoped memory for tpu_custom_call.1']
    %12 = vsyncpa [#allocation3], 0
    %s13 = scalar_lea.sflag [#allocation3], 1
    %14 = vsyncpa %s13, 0
    %15 = vsyncpa [#allocation5], 0
    %s16 = scalar_lea.sflag [#allocation5], 1
    %17 = vsyncpa %s16, 0
    loop: start=0, step=1, limit=4
    $region2: #{tpu_custom_call.1} parent=1 // loop_pre_header
      _
    $region3: #{tpu_custom_call.1} parent=1 // loop_header
      %s19 = sphi 0, %s23
      %p20 = scmp.ge.s32.totalorder %s19, 4
      %s29 = sphi 0, %s31
      %s32 = sphi 0, %s29
      %s33 = sphi 0, %s32
      %s49 = sphi 0, %s33
      %s55 = sphi 0, %s57
      %s58 = sphi 0, %s55
      %s59 = sphi 0, %s58
      %s75 = sphi 0, %s59
      %s79 = sphi 0, %s79
      %s81 = sphi 0, %s79
      %s82 = sphi 0, %s81
      %s96 = sphi 0, %s82
      %s100 = sphi 0, %s100
      %s102 = sphi 0, %s100
      %s103 = sphi 0, %s102
      %s117 = sphi 0, %s103
      %s121 = sphi 0, %s121
      %s123 = sphi 0, %s121
      %s124 = sphi 0, %s123
      %s138 = sphi 0, %s124
      %s144 = sphi 0, %s146
      %s147 = sphi 0, %s144
      %s148 = sphi 0, %s147
      %s164 = sphi 0, %s148
      %s170 = sphi 0, %s172
      %s173 = sphi 0, %s170
      %s174 = sphi 0, %s173
      %s190 = sphi 0, %s174
    $region4: #{tpu_custom_call.1} parent=1 // loop_header_branch
      %22 = sbr.rel (%p20) target = $region8
    $region5: #{tpu_custom_call.1} parent=1 // loop_body
      %s24 = ssub.s32 %s19, 1
      %s25 = ssub.s32 %s19, 2
      %s26 = sadd.s32 %s19, 1
      %s27 = ssub.s32 %s19, %s26
      %p28 = scmp.eq.s32.totalorder %s27, 0
      %s30 = sadd.s32 %s29, 1
      %s31 = scalar_select %p28, %s29, %s30
      %p34 = pneg %p28
      %p35 = scmp.eq.s32.totalorder %s19, 1
      %p36 = por %p34, %p35
      %p37 = scmp.ne.s32.totalorder %s29, %s32
      %p38 = scmp.eq.s32.totalorder %s19, 0
      %p39 = por %p37, %p38
      %p40 = scmp.ne.s32.totalorder %s29, %s32
      %p41 = scmp.eq.s32.totalorder %s24, 1
      %p42 = por %p40, %p41
      %p43 = scmp.ne.s32.totalorder %s32, %s33
      %p44 = scmp.eq.s32.totalorder %s24, 0
      %p45 = por %p43, %p44
      %p46 = scmp.ne.s32.totalorder %s32, %s33
      %p47 = scmp.eq.s32.totalorder %s25, 1
      %p48 = por %p46, %p47
      %p50 = scmp.ne.s32.totalorder %s33, %s49
      %p51 = scmp.eq.s32.totalorder %s25, 0
      %p52 = por %p50, %p51
      %s53 = ssub.s32 %s19, %s26
      %p54 = scmp.eq.s32.totalorder %s53, 0
      %s56 = sadd.s32 %s55, 1
      %s57 = scalar_select %p54, %s55, %s56
      %p60 = pneg %p54
      %p61 = scmp.eq.s32.totalorder %s19, 1
      %p62 = por %p60, %p61
      %p63 = scmp.ne.s32.totalorder %s55, %s58
      %p64 = scmp.eq.s32.totalorder %s19, 0
      %p65 = por %p63, %p64
      %p66 = scmp.ne.s32.totalorder %s55, %s58
      %p67 = scmp.eq.s32.totalorder %s24, 1
      %p68 = por %p66, %p67
      %p69 = scmp.ne.s32.totalorder %s58, %s59
      %p70 = scmp.eq.s32.totalorder %s24, 0
      %p71 = por %p69, %p70
      %p72 = scmp.ne.s32.totalorder %s58, %s59
      %p73 = scmp.eq.s32.totalorder %s25, 1
      %p74 = por %p72, %p73
      %p76 = scmp.ne.s32.totalorder %s59, %s75
      %p77 = scmp.eq.s32.totalorder %s25, 0
      %p78 = por %p76, %p77
      %s80 = sadd.s32 %s79, 1
      %p83 = scmp.eq.s32.totalorder %s19, 1
      %p84 = scmp.ne.s32.totalorder %s79, %s81
      %p85 = scmp.eq.s32.totalorder %s19, 0
      %p86 = por %p84, %p85
      %p87 = scmp.ne.s32.totalorder %s79, %s81
      %p88 = scmp.eq.s32.totalorder %s24, 1
      %p89 = por %p87, %p88
      %p90 = scmp.ne.s32.totalorder %s81, %s82
      %p91 = scmp.eq.s32.totalorder %s24, 0
      %p92 = por %p90, %p91
      %p93 = scmp.ne.s32.totalorder %s81, %s82
      %p94 = scmp.eq.s32.totalorder %s25, 1
      %p95 = por %p93, %p94
      %p97 = scmp.ne.s32.totalorder %s82, %s96
      %p98 = scmp.eq.s32.totalorder %s25, 0
      %p99 = por %p97, %p98
      %s101 = sadd.s32 %s100, 1
      %p104 = scmp.eq.s32.totalorder %s19, 1
      %p105 = scmp.ne.s32.totalorder %s100, %s102
      %p106 = scmp.eq.s32.totalorder %s19, 0
      %p107 = por %p105, %p106
      %p108 = scmp.ne.s32.totalorder %s100, %s102
      %p109 = scmp.eq.s32.totalorder %s24, 1
      %p110 = por %p108, %p109
      %p111 = scmp.ne.s32.totalorder %s102, %s103
      %p112 = scmp.eq.s32.totalorder %s24, 0
      %p113 = por %p111, %p112
      %p114 = scmp.ne.s32.totalorder %s102, %s103
      %p115 = scmp.eq.s32.totalorder %s25, 1
      %p116 = por %p114, %p115
      %p118 = scmp.ne.s32.totalorder %s103, %s117
      %p119 = scmp.eq.s32.totalorder %s25, 0
      %p120 = por %p118, %p119
      %s122 = sadd.s32 %s121, 1
      %p125 = scmp.eq.s32.totalorder %s19, 1
      %p126 = scmp.ne.s32.totalorder %s121, %s123
      %p127 = scmp.eq.s32.totalorder %s19, 0
      %p128 = por %p126, %p127
      %p129 = scmp.ne.s32.totalorder %s121, %s123
      %p130 = scmp.eq.s32.totalorder %s24, 1
      %p131 = por %p129, %p130
      %p132 = scmp.ne.s32.totalorder %s123, %s124
      %p133 = scmp.eq.s32.totalorder %s24, 0
      %p134 = por %p132, %p133
      %p135 = scmp.ne.s32.totalorder %s123, %s124
      %p136 = scmp.eq.s32.totalorder %s25, 1
      %p137 = por %p135, %p136
      %p139 = scmp.ne.s32.totalorder %s124, %s138
      %p140 = scmp.eq.s32.totalorder %s25, 0
      %p141 = por %p139, %p140
      %s142 = ssub.s32 %s19, %s26
      %p143 = scmp.eq.s32.totalorder %s142, 0
      %s145 = sadd.s32 %s144, 1
      %s146 = scalar_select %p143, %s144, %s145
      %p149 = pneg %p143
      %p150 = scmp.eq.s32.totalorder %s19, 1
      %p151 = por %p149, %p150
      %p152 = scmp.ne.s32.totalorder %s144, %s147
      %p153 = scmp.eq.s32.totalorder %s19, 0
      %p154 = por %p152, %p153
      %p155 = scmp.ne.s32.totalorder %s144, %s147
      %p156 = scmp.eq.s32.totalorder %s24, 1
      %p157 = por %p155, %p156
      %p158 = scmp.ne.s32.totalorder %s147, %s148
      %p159 = scmp.eq.s32.totalorder %s24, 0
      %p160 = por %p158, %p159
      %p161 = scmp.ne.s32.totalorder %s147, %s148
      %p162 = scmp.eq.s32.totalorder %s25, 1
      %p163 = por %p161, %p162
      %p165 = scmp.ne.s32.totalorder %s148, %s164
      %p166 = scmp.eq.s32.totalorder %s25, 0
      %p167 = por %p165, %p166
      %s168 = ssub.s32 %s19, %s26
      %p169 = scmp.eq.s32.totalorder %s168, 0
      %s171 = sadd.s32 %s170, 1
      %s172 = scalar_select %p169, %s170, %s171
      %p175 = pneg %p169
      %p176 = scmp.eq.s32.totalorder %s19, 1
      %p177 = por %p175, %p176
      %p178 = scmp.ne.s32.totalorder %s170, %s173
      %p179 = scmp.eq.s32.totalorder %s19, 0
      %p180 = por %p178, %p179
      %p181 = scmp.ne.s32.totalorder %s170, %s173
      %p182 = scmp.eq.s32.totalorder %s24, 1
      %p183 = por %p181, %p182
      %p184 = scmp.ne.s32.totalorder %s173, %s174
      %p185 = scmp.eq.s32.totalorder %s24, 0
      %p186 = por %p184, %p185
      %p187 = scmp.ne.s32.totalorder %s173, %s174
      %p188 = scmp.eq.s32.totalorder %s25, 1
      %p189 = por %p187, %p188
      %p191 = scmp.ne.s32.totalorder %s174, %s190
      %p192 = scmp.eq.s32.totalorder %s25, 0
      %p193 = por %p191, %p192
      %p194 = scmp.le.s32.totalorder 1, %s19
      %p195 = scmp.lt.s32.totalorder %s19, 3
      %p196 = pnand %p194, %p195
      %p197 = pneg %p196
      // Predicated region
      $region9: #{tpu_custom_call.1} parent=5 // pred_check
        _
      $region10: #{tpu_custom_call.1} parent=5 // pred_check_branch
        %199 = sbr.rel (%p196) target = $region12
      $region11: #{tpu_custom_call.1} parent=5 // pred_region
        %s200 = ssub.s32 %s19, 1
        // Predicated region
        $region13: #{tpu_custom_call.1} parent=11 // pred_check
          %p201 = pneg %p92
        $region14: #{tpu_custom_call.1} parent=11 // pred_check_branch
          %203 = sbr.rel (%p201) target = $region16
        $region15: #{tpu_custom_call.1} parent=11 // pred_region
          _
        $region16: #{tpu_custom_call.1} parent=11 // pred_fallthru
          _
        // Predicated region
        $region17: #{tpu_custom_call.1} parent=11 // pred_check
          %p204 = pneg %p113
        $region18: #{tpu_custom_call.1} parent=11 // pred_check_branch
          %206 = sbr.rel (%p204) target = $region20
        $region19: #{tpu_custom_call.1} parent=11 // pred_region
          _
        $region20: #{tpu_custom_call.1} parent=11 // pred_fallthru
          _
        // Predicated region
        $region21: #{tpu_custom_call.1} parent=11 // pred_check
          %p207 = pneg %p134
        $region22: #{tpu_custom_call.1} parent=11 // pred_check_branch
          %209 = sbr.rel (%p207) target = $region24
        $region23: #{tpu_custom_call.1} parent=11 // pred_region
          _
        $region24: #{tpu_custom_call.1} parent=11 // pred_fallthru
          _
      $region12: #{tpu_custom_call.1} parent=5 // pred_fallthru
        _
      %p210 = scmp.lt.s32.totalorder %s19, 2
      // Predicated region
      $region25: #{tpu_custom_call.1} parent=5 // pred_check
        %p211 = pneg %p210
      $region26: #{tpu_custom_call.1} parent=5 // pred_check_branch
        %213 = sbr.rel (%p211) target = $region28
      $region27: #{tpu_custom_call.1} parent=5 // pred_region
        // Predicated region
        $region29: #{tpu_custom_call.1} parent=27 // pred_check
          %p214 = pneg %p39
        $region30: #{tpu_custom_call.1} parent=27 // pred_check_branch
          %216 = sbr.rel (%p214) target = $region32
        $region31: #{tpu_custom_call.1} parent=27 // pred_region
          %p217 = scmp.lt.s32.totalorder %s19, 1
          %s218 = scalar_select %p217, %s19, 1
          %s219 = smul.addr %s218, 8
          %s220 = smul.addr %s219, 4
          %s221 = scalar_lea.vmem %s0, %s220
        $region32: #{tpu_custom_call.1} parent=27 // pred_fallthru
          _
        // Predicated region
        $region33: #{tpu_custom_call.1} parent=27 // pred_check
          %p222 = pneg %p65
        $region34: #{tpu_custom_call.1} parent=27 // pred_check_branch
          %224 = sbr.rel (%p222) target = $region36
        $region35: #{tpu_custom_call.1} parent=27 // pred_region
          %p225 = scmp.lt.s32.totalorder %s19, 1
          %s226 = scalar_select %p225, %s19, 1
          %s227 = smul.addr %s226, 4
          %s228 = smul.addr %s227, 8
          %s229 = scalar_lea.vmem %s1, %s228
        $region36: #{tpu_custom_call.1} parent=27 // pred_fallthru
          _
      $region28: #{tpu_custom_call.1} parent=5 // pred_fallthru
        _
      %p230 = scmp.le.s32.totalorder 1, %s19
      %p231 = scmp.lt.s32.totalorder %s19, 3
      %p232 = pnand %p230, %p231
      %p233 = pneg %p232
      // Predicated region
      $region37: #{tpu_custom_call.1} parent=5 // pred_check
        _
      $region38: #{tpu_custom_call.1} parent=5 // pred_check_branch
        %235 = sbr.rel (%p232) target = $region40
      $region39: #{tpu_custom_call.1} parent=5 // pred_region
        %s236 = ssub.s32 %s19, 1
        %p237 = scmp.lt.s32.totalorder %s24, 1
        %s238 = scalar_select %p237, %s24, 1
        %s239 = smul.addr %s238, 8
        %s240 = smul.addr %s239, 4
        %s241 = scalar_lea.vmem %s0, %s240
        %p242 = pneg %p45
        %p243 = pneg %p42
        %p244 = scmp.lt.s32.totalorder %s24, 1
        %s245 = scalar_select %p244, %s24, 1
        %s246 = smul.addr %s245, 4
        %s247 = smul.addr %s246, 8
        %s248 = scalar_lea.vmem %s1, %s247
        %p249 = pneg %p71
        %p250 = pneg %p68
        %p251 = pneg %p92
        %p252 = pneg %p89
        %p253 = pneg %p113
        %p254 = pneg %p110
        %p255 = pneg %p134
        %p256 = pneg %p131
        %p257 = pneg %p160
        %p258 = pneg %p157
        %s259 = sand.u32 %s147, 1
        %s260 = scalar_lea.sflag [#allocation3], %s259
        %s261 = sand.u32 %s147, 1
        %s262 = scalar_lea.vmem [#allocation2], %s261
        %p263 = pneg %p186
        %p264 = pneg %p183
        %s265 = sand.u32 %s173, 1
        %s266 = scalar_lea.sflag [#allocation5], %s265
        %s267 = sand.u32 %s173, 1
        %s268 = scalar_lea.vmem [#allocation4], %s267
        %p269 = scmp.lt.s32.totalorder %s24, 1
        %s270 = scalar_select %p269, %s24, 1
        %s271 = smul.addr %s270, 8
        %s272 = smul.addr %s271, 4
        %s273 = scalar_lea.vmem %s0, %s272
        %p274 = scmp.lt.s32.totalorder %s24, 1
        %s275 = scalar_select %p274, %s24, 1
        %s276 = smul.addr %s275, 4
        %s277 = smul.addr %s276, 8
        %s278 = scalar_lea.vmem %s1, %s277
        %v280 = vld [vmem:[%s2] sm:$0xf]
        %v281 = vld [vmem:[%s2 + $0x4] sm:$0xf]
        %v282 = vld [vmem:[%s2 + $0x8] sm:$0xf]
        %v283 = vld [vmem:[%s2 + $0xc] sm:$0xf]
        %v284 = vld [vmem:[%s3] sm:$0xf]
        %v285 = vld [vmem:[%s3 + $0x4] sm:$0xf]
        %v286 = vld [vmem:[%s3 + $0x8] sm:$0xf]
        %v287 = vld [vmem:[%s3 + $0xc] sm:$0xf]
        %v288 = vld [vmem:[%s3 + $0x10] sm:$0xf]
        %v289 = vld [vmem:[%s3 + $0x14] sm:$0xf]
        %v290 = vld [vmem:[%s3 + $0x18] sm:$0xf]
        %v291 = vld [vmem:[%s3 + $0x1c] sm:$0xf]
        %v292 = vld [vmem:[%s4] sm:$0xff]
        %v293 = vld [vmem:[%s4 + $0x8] sm:$0xff]
        %v294 = vld [vmem:[%s4 + $0x10] sm:$0xff]
        %v295 = vld [vmem:[%s4 + $0x18] sm:$0xff]
        %v296 = vld [vmem:[%s4 + $0x20] sm:$0xff]
        %v297 = vld [vmem:[%s4 + $0x28] sm:$0xff]
        %v298 = vld [vmem:[%s4 + $0x30] sm:$0xff]
        %v299 = vld [vmem:[%s4 + $0x38] sm:$0xff]
        %v300 = vld [vmem:[%s273] sm:$0xf]
        %v301 = vld [vmem:[%s273 + $0x4] sm:$0xf]
        %v302 = vld [vmem:[%s273 + $0x8] sm:$0xf]
        %v303 = vld [vmem:[%s273 + $0xc] sm:$0xf]
        %v304 = vld [vmem:[%s273 + $0x10] sm:$0xf]
        %v305 = vld [vmem:[%s273 + $0x14] sm:$0xf]
        %v306 = vld [vmem:[%s273 + $0x18] sm:$0xf]
        %v307 = vld [vmem:[%s273 + $0x1c] sm:$0xf]
        %v308 = vunpack.c.l.bf16 %v300
        %v309 = vunpack.c.l.bf16 %v301
        %v310 = vunpack.c.l.bf16 %v302
        %v311 = vunpack.c.l.bf16 %v303
        %v312 = vunpack.c.l.bf16 %v304
        %v313 = vunpack.c.l.bf16 %v305
        %v314 = vunpack.c.l.bf16 %v306
        %v315 = vunpack.c.l.bf16 %v307
        %v316 = vld [vmem:[%s278] sm:$0xff]
        %v317 = vld [vmem:[%s278 + $0x8] sm:$0xff]
        %v318 = vld [vmem:[%s278 + $0x10] sm:$0xff]
        %v319 = vld [vmem:[%s278 + $0x18] sm:$0xff]
        %321 = vset.pattern.permute.xlu0 0
        %322 = vperm.xlu0 %321, %v316
        %v323 = vpop.permute.xlu0 %322
        %326 = vset.pattern.permute.xlu0 0
        %327 = vperm.xlu0 %326, %v317
        %v328 = vpop.permute.xlu0 %327
        %331 = vset.pattern.permute.xlu0 0
        %332 = vperm.xlu0 %331, %v318
        %v333 = vpop.permute.xlu0 %332
        %336 = vset.pattern.permute.xlu0 0
        %337 = vperm.xlu0 %336, %v319
        %v338 = vpop.permute.xlu0 %337
        %v344 = vunpack.c.l.b16 %v280
        %v345 = vunpack.c.l.b16 %v281
        %v346 = vunpack.c.l.b16 %v282
        %v347 = vunpack.c.l.b16 %v283
        %v348 = vpack.c.b16 %v345, %v344
        %v349 = vpack.c.b16 %v347, %v346
        %v358 = vunpack.c.l.b16 %v300
        %v359 = vunpack.c.l.b16 %v301
        %v360 = vunpack.c.l.b16 %v302
        %v361 = vunpack.c.l.b16 %v303
        %v362 = vunpack.c.l.b16 %v304
        %v363 = vunpack.c.l.b16 %v305
        %v364 = vunpack.c.l.b16 %v306
        %v365 = vunpack.c.l.b16 %v307
        %v366 = vpack.c.b16 %v359, %v358
        %v367 = vpack.c.b16 %v361, %v360
        %v368 = vpack.c.b16 %v363, %v362
        %v369 = vpack.c.b16 %v365, %v364
        %vm374 = vcmask 523264
        %v376 = vsel %vm374, %v348, 0
        %v379 = vsel %vm374, %v349, 0
        %381 = vmatprep.subr.bf16.mxu0 0
        %382 = vmatpush1.bf16.msra.mxu0 %v366
        %383 = vmatprep.subr.bf16.mxu0 0
        %384 = vmatpush1.bf16.msra.mxu0 %v367
        %385 = vmatprep.subr.bf16.mxu0 0
        %386 = vmatpush1.bf16.msra.mxu0 %v368
        %387 = vmatprep.subr.bf16.mxu0 0
        %388 = vmatpush1.bf16.msra.mxu0 %v369
        %389 = vmatprep.subr.bf16.mxu0 0
        %390 = vmatpush1.bf16.msra.mxu0 0
        %391 = vmatprep.subr.bf16.mxu0 0
        %392 = vmatpush1.bf16.msra.mxu0 0
        %393 = vmatprep.subr.bf16.mxu0 0
        %394 = vmatpush1.bf16.msra.mxu0 0
        %395 = vmatprep.subr.bf16.mxu0 0
        %396 = vmatpush1.bf16.msra.mxu0 0
        %397 = vmatprep.subr.bf16.mxu0 0
        %398 = vmatpush1.bf16.msra.mxu0 0
        %399 = vmatprep.subr.bf16.mxu0 0
        %400 = vmatpush1.bf16.msra.mxu0 0
        %401 = vmatprep.subr.bf16.mxu0 0
        %402 = vmatpush1.bf16.msra.mxu0 0
        %403 = vmatprep.subr.bf16.mxu0 0
        %404 = vmatpush1.bf16.msra.mxu0 0
        %405 = vmatprep.subr.bf16.mxu0 0
        %406 = vmatpush1.bf16.msra.mxu0 0
        %407 = vmatprep.subr.bf16.mxu0 0
        %408 = vmatpush1.bf16.msra.mxu0 0
        %409 = vmatprep.subr.bf16.mxu0 0
        %410 = vmatpush1.bf16.msra.mxu0 0
        %411 = vmatprep.subr.bf16.mxu0 0
        %412 = vmatpush1.bf16.msra.mxu0 0
        %413 = vmatprep.mubr.bf16.mxu0 0
        %414 = vmatmul.mubr.bf16.gmra.mrb[0].mxu0 %v376
        %v415 = vpop.f32.mrb[0].mxu0
        %v416 = vadd.f32 %v323, %v415
        %v417 = vpop.f32.mrb[0].mxu0
        %v418 = vpop.f32.mrb[0].mxu0
        %v419 = vadd.f32 %v328, %v418
        %v420 = vpop.f32.mrb[0].mxu0
        %421 = vmatprep.mubr.bf16.mxu0 0
        %422 = vmatmul.mubr.bf16.gmra.mrb[0].mxu0 %v379
        %v423 = vpop.f32.mrb[0].mxu0
        %v424 = vadd.f32 %v333, %v423
        %v425 = vpop.f32.mrb[0].mxu0
        %v426 = vpop.f32.mrb[0].mxu0
        %v427 = vadd.f32 %v338, %v426
        %v428 = vpop.f32.mrb[0].mxu0
        %429 = vdwg.mxu0
        %v430 = vtanh.pop %v416
        %v431 = vtanh.pop %v419
        %v432 = vtanh.pop %v424
        %v433 = vtanh.pop %v427
        %v434 = vpack.c.bf16 %v431, %v430
        %v435 = vpack.c.bf16 %v433, %v432
        %437 = vset.pattern.permute.xlu0 0
        %438 = vperm.xlu0 %437, %v292
        %v439 = vpop.permute.xlu0 %438
        %442 = vset.pattern.permute.xlu0 0
        %443 = vperm.xlu0 %442, %v293
        %v444 = vpop.permute.xlu0 %443
        %447 = vset.pattern.permute.xlu0 0
        %448 = vperm.xlu0 %447, %v294
        %v449 = vpop.permute.xlu0 %448
        %452 = vset.pattern.permute.xlu0 0
        %453 = vperm.xlu0 %452, %v295
        %v454 = vpop.permute.xlu0 %453
        %457 = vset.pattern.permute.xlu0 0
        %458 = vperm.xlu0 %457, %v296
        %v459 = vpop.permute.xlu0 %458
        %462 = vset.pattern.permute.xlu0 0
        %463 = vperm.xlu0 %462, %v297
        %v464 = vpop.permute.xlu0 %463
        %467 = vset.pattern.permute.xlu0 0
        %468 = vperm.xlu0 %467, %v298
        %v469 = vpop.permute.xlu0 %468
        %472 = vset.pattern.permute.xlu0 0
        %473 = vperm.xlu0 %472, %v299
        %v474 = vpop.permute.xlu0 %473
        %v484 = vunpack.c.l.b16 %v284
        %v485 = vunpack.c.l.b16 %v285
        %v486 = vunpack.c.l.b16 %v286
        %v487 = vunpack.c.l.b16 %v287
        %v488 = vunpack.c.l.b16 %v288
        %v489 = vunpack.c.l.b16 %v289
        %v490 = vunpack.c.l.b16 %v290
        %v491 = vunpack.c.l.b16 %v291
        %v492 = vpack.c.b16 %v485, %v484
        %v493 = vpack.c.b16 %v487, %v486
        %v494 = vpack.c.b16 %v489, %v488
        %v495 = vpack.c.b16 %v491, %v490
        %vm496 = vcmask 261120
        %v498 = vsel %vm496, %v492, 0
        %v501 = vsel %vm496, %v493, 0
        %v504 = vsel %vm496, %v494, 0
        %v507 = vsel %vm496, %v495, 0
        %509 = vmatprep.subr.bf16.mxu0 0
        %510 = vmatpush1.bf16.msra.mxu0 %v434
        %511 = vmatprep.subr.bf16.mxu0 0
        %512 = vmatpush1.bf16.msra.mxu0 %v435
        %513 = vmatprep.subr.bf16.mxu0 0
        %514 = vmatpush1.bf16.msra.mxu0 0
        %515 = vmatprep.subr.bf16.mxu0 0
        %516 = vmatpush1.bf16.msra.mxu0 0
        %517 = vmatprep.subr.bf16.mxu0 0
        %518 = vmatpush1.bf16.msra.mxu0 0
        %519 = vmatprep.subr.bf16.mxu0 0
        %520 = vmatpush1.bf16.msra.mxu0 0
        %521 = vmatprep.subr.bf16.mxu0 0
        %522 = vmatpush1.bf16.msra.mxu0 0
        %523 = vmatprep.subr.bf16.mxu0 0
        %524 = vmatpush1.bf16.msra.mxu0 0
        %525 = vmatprep.subr.bf16.mxu0 0
        %526 = vmatpush1.bf16.msra.mxu0 0
        %527 = vmatprep.subr.bf16.mxu0 0
        %528 = vmatpush1.bf16.msra.mxu0 0
        %529 = vmatprep.subr.bf16.mxu0 0
        %530 = vmatpush1.bf16.msra.mxu0 0
        %531 = vmatprep.subr.bf16.mxu0 0
        %532 = vmatpush1.bf16.msra.mxu0 0
        %533 = vmatprep.subr.bf16.mxu0 0
        %534 = vmatpush1.bf16.msra.mxu0 0
        %535 = vmatprep.subr.bf16.mxu0 0
        %536 = vmatpush1.bf16.msra.mxu0 0
        %537 = vmatprep.subr.bf16.mxu0 0
        %538 = vmatpush1.bf16.msra.mxu0 0
        %539 = vmatprep.subr.bf16.mxu0 0
        %540 = vmatpush1.bf16.msra.mxu0 0
        %541 = vmatprep.mubr.bf16.mxu0 0
        %542 = vmatmul.mubr.bf16.gmra.mrb[0].mxu0 %v498
        %v543 = vpop.f32.mrb[0].mxu0
        %v544 = vadd.f32 %v439, %v543
        %v545 = vpop.f32.mrb[0].mxu0
        %v546 = vpop.f32.mrb[0].mxu0
        %v547 = vadd.f32 %v444, %v546
        %v548 = vpop.f32.mrb[0].mxu0
        %549 = vmatprep.mubr.bf16.mxu0 0
        %550 = vmatmul.mubr.bf16.gmra.mrb[0].mxu0 %v501
        %v551 = vpop.f32.mrb[0].mxu0
        %v552 = vadd.f32 %v449, %v551
        %v553 = vpop.f32.mrb[0].mxu0
        %v554 = vpop.f32.mrb[0].mxu0
        %v555 = vadd.f32 %v454, %v554
        %v556 = vpop.f32.mrb[0].mxu0
        %557 = vmatprep.mubr.bf16.mxu0 0
        %558 = vmatmul.mubr.bf16.gmra.mrb[0].mxu0 %v504
        %v559 = vpop.f32.mrb[0].mxu0
        %v560 = vadd.f32 %v459, %v559
        %v561 = vpop.f32.mrb[0].mxu0
        %v562 = vpop.f32.mrb[0].mxu0
        %v563 = vadd.f32 %v464, %v562
        %v564 = vpop.f32.mrb[0].mxu0
        %565 = vmatprep.mubr.bf16.mxu0 0
        %566 = vmatmul.mubr.bf16.gmra.mrb[0].mxu0 %v507
        %v567 = vpop.f32.mrb[0].mxu0
        %v568 = vadd.f32 %v469, %v567
        %v569 = vpop.f32.mrb[0].mxu0
        %v570 = vpop.f32.mrb[0].mxu0
        %v571 = vadd.f32 %v474, %v570
        %v572 = vpop.f32.mrb[0].mxu0
        %573 = vdwg.mxu0
        %vm574 = vcmask 64512
        %v575 = vsel %vm574, %v544, -inf
        %576 = vmax.xlane.f32.xlu0 %v575
        %v577 = vpop.xlane.xlu0 %576
        %v578 = vsel %vm574, %v547, -inf
        %579 = vmax.xlane.f32.xlu0 %v578
        %v580 = vpop.xlane.xlu0 %579
        %v581 = vsel %vm574, %v552, -inf
        %582 = vmax.xlane.f32.xlu0 %v581
        %v583 = vpop.xlane.xlu0 %582
        %v584 = vsel %vm574, %v555, -inf
        %585 = vmax.xlane.f32.xlu0 %v584
        %v586 = vpop.xlane.xlu0 %585
        %v587 = vsel %vm574, %v560, -inf
        %588 = vmax.xlane.f32.xlu0 %v587
        %v589 = vpop.xlane.xlu0 %588
        %v590 = vsel %vm574, %v563, -inf
        %591 = vmax.xlane.f32.xlu0 %v590
        %v592 = vpop.xlane.xlu0 %591
        %v593 = vsel %vm574, %v568, -inf
        %594 = vmax.xlane.f32.xlu0 %v593
        %v595 = vpop.xlane.xlu0 %594
        %v596 = vsel %vm574, %v571, -inf
        %597 = vmax.xlane.f32.xlu0 %v596
        %v598 = vpop.xlane.xlu0 %597
        %v599 = vsub.f32 %v544, %v577
        %v600 = vsub.f32 %v547, %v580
        %v601 = vsub.f32 %v552, %v583
        %v602 = vsub.f32 %v555, %v586
        %v603 = vsub.f32 %v560, %v589
        %v604 = vsub.f32 %v563, %v592
        %v605 = vsub.f32 %v568, %v595
        %v606 = vsub.f32 %v571, %v598
        %v607 = vmul.f32 %v599, 1.442695
        %v608 = vpow.pop %v607
        %v609 = vmul.f32 %v600, 1.442695
        %v610 = vpow.pop %v609
        %v611 = vmul.f32 %v601, 1.442695
        %v612 = vpow.pop %v611
        %v613 = vmul.f32 %v602, 1.442695
        %v614 = vpow.pop %v613
        %v615 = vmul.f32 %v603, 1.442695
        %v616 = vpow.pop %v615
        %v617 = vmul.f32 %v604, 1.442695
        %v618 = vpow.pop %v617
        %v619 = vmul.f32 %v605, 1.442695
        %v620 = vpow.pop %v619
        %v621 = vmul.f32 %v606, 1.442695
        %v622 = vpow.pop %v621
        %v623 = vmul.f32 %v608, %v308
        %v624 = vmul.f32 %v610, %v309
        %v625 = vmul.f32 %v612, %v310
        %v626 = vmul.f32 %v614, %v311
        %v627 = vmul.f32 %v616, %v312
        %v628 = vmul.f32 %v618, %v313
        %v629 = vmul.f32 %v620, %v314
        %v630 = vmul.f32 %v622, %v315
        %v631 = vsel %vm574, %v608, 0.0
        %632 = vadd.xlane.f32.xlu0 %v631
        %v633 = vpop.xlane.xlu0 %632
        %v634 = vsel %vm574, %v610, 0.0
        %635 = vadd.xlane.f32.xlu0 %v634
        %v636 = vpop.xlane.xlu0 %635
        %v637 = vsel %vm574, %v612, 0.0
        %638 = vadd.xlane.f32.xlu0 %v637
        %v639 = vpop.xlane.xlu0 %638
        %v640 = vsel %vm574, %v614, 0.0
        %641 = vadd.xlane.f32.xlu0 %v640
        %v642 = vpop.xlane.xlu0 %641
        %v643 = vsel %vm574, %v616, 0.0
        %644 = vadd.xlane.f32.xlu0 %v643
        %v645 = vpop.xlane.xlu0 %644
        %v646 = vsel %vm574, %v618, 0.0
        %647 = vadd.xlane.f32.xlu0 %v646
        %v648 = vpop.xlane.xlu0 %647
        %v649 = vsel %vm574, %v620, 0.0
        %650 = vadd.xlane.f32.xlu0 %v649
        %v651 = vpop.xlane.xlu0 %650
        %v652 = vsel %vm574, %v622, 0.0
        %653 = vadd.xlane.f32.xlu0 %v652
        %v654 = vpop.xlane.xlu0 %653
        %v655 = vsel %vm574, %v623, 0.0
        %656 = vadd.xlane.f32.xlu0 %v655
        %v657 = vpop.xlane.xlu0 %656
        %v658 = vsel %vm574, %v624, 0.0
        %659 = vadd.xlane.f32.xlu0 %v658
        %v660 = vpop.xlane.xlu0 %659
        %v661 = vsel %vm574, %v625, 0.0
        %662 = vadd.xlane.f32.xlu0 %v661
        %v663 = vpop.xlane.xlu0 %662
        %v664 = vsel %vm574, %v626, 0.0
        %665 = vadd.xlane.f32.xlu0 %v664
        %v666 = vpop.xlane.xlu0 %665
        %v667 = vsel %vm574, %v627, 0.0
        %668 = vadd.xlane.f32.xlu0 %v667
        %v669 = vpop.xlane.xlu0 %668
        %v670 = vsel %vm574, %v628, 0.0
        %671 = vadd.xlane.f32.xlu0 %v670
        %v672 = vpop.xlane.xlu0 %671
        %v673 = vsel %vm574, %v629, 0.0
        %674 = vadd.xlane.f32.xlu0 %v673
        %v675 = vpop.xlane.xlu0 %674
        %v676 = vsel %vm574, %v630, 0.0
        %677 = vadd.xlane.f32.xlu0 %v676
        %v678 = vpop.xlane.xlu0 %677
        %v679 = vmul.f32 %v623, %v308
        %v680 = vmul.f32 %v624, %v309
        %v681 = vmul.f32 %v625, %v310
        %v682 = vmul.f32 %v626, %v311
        %v683 = vmul.f32 %v627, %v312
        %v684 = vmul.f32 %v628, %v313
        %v685 = vmul.f32 %v629, %v314
        %v686 = vmul.f32 %v630, %v315
        %v687 = vsel %vm574, %v679, 0.0
        %688 = vadd.xlane.f32.xlu0 %v687
        %v689 = vpop.xlane.xlu0 %688
        %v690 = vsel %vm574, %v680, 0.0
        %691 = vadd.xlane.f32.xlu0 %v690
        %v692 = vpop.xlane.xlu0 %691
        %v693 = vsel %vm574, %v681, 0.0
        %694 = vadd.xlane.f32.xlu0 %v693
        %v695 = vpop.xlane.xlu0 %694
        %v696 = vsel %vm574, %v682, 0.0
        %697 = vadd.xlane.f32.xlu0 %v696
        %v698 = vpop.xlane.xlu0 %697
        %v699 = vsel %vm574, %v683, 0.0
        %700 = vadd.xlane.f32.xlu0 %v699
        %v701 = vpop.xlane.xlu0 %700
        %v702 = vsel %vm574, %v684, 0.0
        %703 = vadd.xlane.f32.xlu0 %v702
        %v704 = vpop.xlane.xlu0 %703
        %v705 = vsel %vm574, %v685, 0.0
        %706 = vadd.xlane.f32.xlu0 %v705
        %v707 = vpop.xlane.xlu0 %706
        %v708 = vsel %vm574, %v686, 0.0
        %709 = vadd.xlane.f32.xlu0 %v708
        %v710 = vpop.xlane.xlu0 %709
        %v711 = vrcp.pop %v633
        %v712 = vmul.f32 1.0, %v711
        %v713 = vrcp.pop %v636
        %v714 = vmul.f32 1.0, %v713
        %v715 = vrcp.pop %v639
        %v716 = vmul.f32 1.0, %v715
        %v717 = vrcp.pop %v642
        %v718 = vmul.f32 1.0, %v717
        %v719 = vrcp.pop %v645
        %v720 = vmul.f32 1.0, %v719
        %v721 = vrcp.pop %v648
        %v722 = vmul.f32 1.0, %v721
        %v723 = vrcp.pop %v651
        %v724 = vmul.f32 1.0, %v723
        %v725 = vrcp.pop %v654
        %v726 = vmul.f32 1.0, %v725
        %v727 = vmul.f32 %v657, %v712
        %v728 = vmul.f32 %v660, %v714
        %v729 = vmul.f32 %v663, %v716
        %v730 = vmul.f32 %v666, %v718
        %v731 = vmul.f32 %v669, %v720
        %v732 = vmul.f32 %v672, %v722
        %v733 = vmul.f32 %v675, %v724
        %v734 = vmul.f32 %v678, %v726
        %v735 = vmul.f32 %v727, %v657
        %v736 = vmul.f32 %v728, %v660
        %v737 = vmul.f32 %v729, %v663
        %v738 = vmul.f32 %v730, %v666
        %v739 = vmul.f32 %v731, %v669
        %v740 = vmul.f32 %v732, %v672
        %v741 = vmul.f32 %v733, %v675
        %v742 = vmul.f32 %v734, %v678
        %v743 = vsub.f32 %v689, %v735
        %v744 = vsub.f32 %v692, %v736
        %v745 = vsub.f32 %v695, %v737
        %v746 = vsub.f32 %v698, %v738
        %v747 = vsub.f32 %v701, %v739
        %v748 = vsub.f32 %v704, %v740
        %v749 = vsub.f32 %v707, %v741
        %v750 = vsub.f32 %v710, %v742
        %v751 = vmul.f32 %v743, %v712
        %v752 = vmul.f32 %v744, %v714
        %v753 = vmul.f32 %v745, %v716
        %v754 = vmul.f32 %v746, %v718
        %v755 = vmul.f32 %v747, %v720
        %v756 = vmul.f32 %v748, %v722
        %v757 = vmul.f32 %v749, %v724
        %v758 = vmul.f32 %v750, %v726
        %v759 = vmax.f32 %v751, 1e-07
        %v760 = vmax.f32 %v752, 1e-07
        %v761 = vmax.f32 %v753, 1e-07
        %v762 = vmax.f32 %v754, 1e-07
        %v763 = vmax.f32 %v755, 1e-07
        %v764 = vmax.f32 %v756, 1e-07
        %v765 = vmax.f32 %v757, 1e-07
        %v766 = vmax.f32 %v758, 1e-07
        %v767 = vrsqrt.pop %v759
        %v768 = vmul.f32 %v759, %v767
        %vm769 = vcmp.eq.f32.partialorder %v759, inf
        %v770 = vsel %vm769, %v759, %v768
        %vm771 = vcmp.eq.f32.partialorder %v759, 0.0
        %v772 = vand.u32 %v759, 2147483648
        %v773 = vsel %vm771, %v772, %v770
        %v774 = vrsqrt.pop %v760
        %v775 = vmul.f32 %v760, %v774
        %vm776 = vcmp.eq.f32.partialorder %v760, inf
        %v777 = vsel %vm776, %v760, %v775
        %vm778 = vcmp.eq.f32.partialorder %v760, 0.0
        %v779 = vand.u32 %v760, 2147483648
        %v780 = vsel %vm778, %v779, %v777
        %v781 = vrsqrt.pop %v761
        %v782 = vmul.f32 %v761, %v781
        %vm783 = vcmp.eq.f32.partialorder %v761, inf
        %v784 = vsel %vm783, %v761, %v782
        %vm785 = vcmp.eq.f32.partialorder %v761, 0.0
        %v786 = vand.u32 %v761, 2147483648
        %v787 = vsel %vm785, %v786, %v784
        %v788 = vrsqrt.pop %v762
        %v789 = vmul.f32 %v762, %v788
        %vm790 = vcmp.eq.f32.partialorder %v762, inf
        %v791 = vsel %vm790, %v762, %v789
        %vm792 = vcmp.eq.f32.partialorder %v762, 0.0
        %v793 = vand.u32 %v762, 2147483648
        %v794 = vsel %vm792, %v793, %v791
        %v795 = vrsqrt.pop %v763
        %v796 = vmul.f32 %v763, %v795
        %vm797 = vcmp.eq.f32.partialorder %v763, inf
        %v798 = vsel %vm797, %v763, %v796
        %vm799 = vcmp.eq.f32.partialorder %v763, 0.0
        %v800 = vand.u32 %v763, 2147483648
        %v801 = vsel %vm799, %v800, %v798
        %v802 = vrsqrt.pop %v764
        %v803 = vmul.f32 %v764, %v802
        %vm804 = vcmp.eq.f32.partialorder %v764, inf
        %v805 = vsel %vm804, %v764, %v803
        %vm806 = vcmp.eq.f32.partialorder %v764, 0.0
        %v807 = vand.u32 %v764, 2147483648
        %v808 = vsel %vm806, %v807, %v805
        %v809 = vrsqrt.pop %v765
        %v810 = vmul.f32 %v765, %v809
        %vm811 = vcmp.eq.f32.partialorder %v765, inf
        %v812 = vsel %vm811, %v765, %v810
        %vm813 = vcmp.eq.f32.partialorder %v765, 0.0
        %v814 = vand.u32 %v765, 2147483648
        %v815 = vsel %vm813, %v814, %v812
        %v816 = vrsqrt.pop %v766
        %v817 = vmul.f32 %v766, %v816
        %vm818 = vcmp.eq.f32.partialorder %v766, inf
        %v819 = vsel %vm818, %v766, %v817
        %vm820 = vcmp.eq.f32.partialorder %v766, 0.0
        %v821 = vand.u32 %v766, 2147483648
        %v822 = vsel %vm820, %v821, %v819
        %v831 = vlaneseq
        %v832 = vand.u32 %v831, 127
        %v833 = vlaneseq
        %v834 = vshrl.u32 %v833, 7
        %v835 = vsub.s32 %v832, %v834
        %v836 = vrot.slane %v727, %v835
        %v837 = vadd.s32 %v832, 4294967288
        %v838 = vlaneseq
        %v839 = vshrl.u32 %v838, 7
        %v840 = vsub.s32 %v837, %v839
        %v841 = vrot.slane %v728, %v840
        %vm842 = vcmask 130112
        %v843 = vsel %vm842, %v841, %v836
        %v844 = vadd.s32 %v832, 4294967280
        %v845 = vlaneseq
        %v846 = vshrl.u32 %v845, 7
        %v847 = vsub.s32 %v844, %v846
        %v848 = vrot.slane %v729, %v847
        %vm849 = vcmask 195712
        %v850 = vsel %vm849, %v848, %v843
        %v851 = vadd.s32 %v832, 4294967272
        %v852 = vlaneseq
        %v853 = vshrl.u32 %v852, 7
        %v854 = vsub.s32 %v851, %v853
        %v855 = vrot.slane %v730, %v854
        %vm856 = vcmask 261312
        %v857 = vsel %vm856, %v855, %v850
        %v858 = vadd.s32 %v832, 4294967264
        %v859 = vlaneseq
        %v860 = vshrl.u32 %v859, 7
        %v861 = vsub.s32 %v858, %v860
        %v862 = vrot.slane %v731, %v861
        %vm863 = vcmask 326912
        %v864 = vsel %vm863, %v862, %v857
        %v865 = vadd.s32 %v832, 4294967256
        %v866 = vlaneseq
        %v867 = vshrl.u32 %v866, 7
        %v868 = vsub.s32 %v865, %v867
        %v869 = vrot.slane %v732, %v868
        %vm870 = vcmask 392512
        %v871 = vsel %vm870, %v869, %v864
        %v872 = vadd.s32 %v832, 4294967248
        %v873 = vlaneseq
        %v874 = vshrl.u32 %v873, 7
        %v875 = vsub.s32 %v872, %v874
        %v876 = vrot.slane %v733, %v875
        %vm877 = vcmask 458112
        %v878 = vsel %vm877, %v876, %v871
        %v879 = vadd.s32 %v832, 4294967240
        %v880 = vlaneseq
        %v881 = vshrl.u32 %v880, 7
        %v882 = vsub.s32 %v879, %v881
        %v883 = vrot.slane %v734, %v882
        %vm884 = vcmask 523712
        %v885 = vsel %vm884, %v883, %v878
        %vm887 = vcmask 516096
        %888 = vst.msk [vmem:[%s262] sm:$0x1] %vm887, %v885
        %v897 = vlaneseq
        %v898 = vshrl.u32 %v897, 7
        %v899 = vsub.s32 %v832, %v898
        %v900 = vrot.slane %v773, %v899
        %v901 = vlaneseq
        %v902 = vshrl.u32 %v901, 7
        %v903 = vsub.s32 %v837, %v902
        %v904 = vrot.slane %v780, %v903
        %v905 = vsel %vm842, %v904, %v900
        %v906 = vlaneseq
        %v907 = vshrl.u32 %v906, 7
        %v908 = vsub.s32 %v844, %v907
        %v909 = vrot.slane %v787, %v908
        %v910 = vsel %vm849, %v909, %v905
        %v911 = vlaneseq
        %v912 = vshrl.u32 %v911, 7
        %v913 = vsub.s32 %v851, %v912
        %v914 = vrot.slane %v794, %v913
        %v915 = vsel %vm856, %v914, %v910
        %v916 = vlaneseq
        %v917 = vshrl.u32 %v916, 7
        %v918 = vsub.s32 %v858, %v917
        %v919 = vrot.slane %v801, %v918
        %v920 = vsel %vm863, %v919, %v915
        %v921 = vlaneseq
        %v922 = vshrl.u32 %v921, 7
        %v923 = vsub.s32 %v865, %v922
        %v924 = vrot.slane %v808, %v923
        %v925 = vsel %vm870, %v924, %v920
        %v926 = vlaneseq
        %v927 = vshrl.u32 %v926, 7
        %v928 = vsub.s32 %v872, %v927
        %v929 = vrot.slane %v815, %v928
        %v930 = vsel %vm877, %v929, %v925
        %v931 = vlaneseq
        %v932 = vshrl.u32 %v931, 7
        %v933 = vsub.s32 %v879, %v932
        %v934 = vrot.slane %v822, %v933
        %v935 = vsel %vm884, %v934, %v930
        %937 = vst.msk [vmem:[%s268] sm:$0x1] %vm887, %v935
        %s938 = sand.u32 %s147, 1
        %s939 = scalar_lea.sflag [#allocation3], %s938
        %s940 = sand.u32 %s147, 1
        %s941 = scalar_lea.vmem [#allocation2], %s940
        %s942 = sand.u32 %s173, 1
        %s943 = scalar_lea.sflag [#allocation5], %s942
        %s944 = sand.u32 %s173, 1
        %s945 = scalar_lea.vmem [#allocation4], %s944
        // Predicated region
        $region41: #{tpu_custom_call.1} parent=39 // pred_check
          %p946 = pneg %p157
        $region42: #{tpu_custom_call.1} parent=39 // pred_check_branch
          %948 = sbr.rel (%p946) target = $region44
        $region43: #{tpu_custom_call.1} parent=39 // pred_region
          %s950 = ssub.s32 16, 16
          %951 = vsyncadd %s939, %s950
          %s952 = smul.addr %s24, 16
          %s953 = scalar_lea.hbm %s5, %s952
          %s955 = sshll.u32 %s941, 4
          %s956 = int_to_ptr.vmem [resolvable:$true] %s955
          %958 = dma.vmem_to_hbm [thread:$0]  %s956, 16, %s953, %s939
        $region44: #{tpu_custom_call.1} parent=39 // pred_fallthru
          _
        // Predicated region
        $region45: #{tpu_custom_call.1} parent=39 // pred_check
          %p959 = pneg %p183
        $region46: #{tpu_custom_call.1} parent=39 // pred_check_branch
          %961 = sbr.rel (%p959) target = $region48
        $region47: #{tpu_custom_call.1} parent=39 // pred_region
          %s963 = ssub.s32 16, 16
          %964 = vsyncadd %s943, %s963
          %s965 = smul.addr %s24, 16
          %s966 = scalar_lea.hbm %s6, %s965
          %s968 = sshll.u32 %s945, 4
          %s969 = int_to_ptr.vmem [resolvable:$true] %s968
          %971 = dma.vmem_to_hbm [thread:$0]  %s969, 16, %s966, %s943
        $region48: #{tpu_custom_call.1} parent=39 // pred_fallthru
          _
      $region40: #{tpu_custom_call.1} parent=5 // pred_fallthru
        _
      %p972 = scmp.le.s32.totalorder 2, %s19
      // Predicated region
      $region49: #{tpu_custom_call.1} parent=5 // pred_check
        %p973 = pneg %p972
      $region50: #{tpu_custom_call.1} parent=5 // pred_check_branch
        %975 = sbr.rel (%p973) target = $region52
      $region51: #{tpu_custom_call.1} parent=5 // pred_region
        %s976 = ssub.s32 %s19, 2
        // Predicated region
        $region53: #{tpu_custom_call.1} parent=51 // pred_check
          %p977 = pneg %p163
        $region54: #{tpu_custom_call.1} parent=51 // pred_check_branch
          %979 = sbr.rel (%p977) target = $region56
        $region55: #{tpu_custom_call.1} parent=51 // pred_region
          %s980 = sand.u32 %s148, 1
          %s981 = scalar_lea.sflag [#allocation3], %s980
          %s982 = sand.u32 %s148, 1
          %s983 = scalar_lea.vmem [#allocation2], %s982
          %984 = dma.done %s981, 16
        $region56: #{tpu_custom_call.1} parent=51 // pred_fallthru
          _
        // Predicated region
        $region57: #{tpu_custom_call.1} parent=51 // pred_check
          %p985 = pneg %p189
        $region58: #{tpu_custom_call.1} parent=51 // pred_check_branch
          %987 = sbr.rel (%p985) target = $region60
        $region59: #{tpu_custom_call.1} parent=51 // pred_region
          %s988 = sand.u32 %s174, 1
          %s989 = scalar_lea.sflag [#allocation5], %s988
          %s990 = sand.u32 %s174, 1
          %s991 = scalar_lea.vmem [#allocation4], %s990
          %992 = dma.done %s989, 16
        $region60: #{tpu_custom_call.1} parent=51 // pred_fallthru
          _
      $region52: #{tpu_custom_call.1} parent=5 // pred_fallthru
        _
    $region6: #{tpu_custom_call.1} parent=1 // loop_footer
      %s23 = sadd.s32 1, %s19
    $region7: #{tpu_custom_call.1} parent=1 // loop_footer_branch
      %18 = sbr.rel target = $region3
    $region8: #{tpu_custom_call.1} parent=1 // loop_exit
      _
    %993 = vsyncpa [#allocation3], 1
    %s994 = scalar_lea.sflag [#allocation3], 1
    %995 = vsyncpa %s994, 1
    %996 = vsyncpa [#allocation5], 1
    %s997 = scalar_lea.sflag [#allocation5], 1
    %998 = vsyncpa %s997, 1

</llo_original>
